<compile_context>
chip_gen: v6e
topology: v6e:2x2x1
jax: 0.10.0
libtpu: 0.0.40
codegen_flags: <defaults>
</compile_context>

<pallas_src>
import jax
import jax.numpy as jnp
from jax.experimental import pallas as pl
from jax.experimental.pallas import tpu as pltpu


def _round_up(v, m):
    return ((v + m - 1) // m) * m


def _prep_kernel(m_ref, x_ref, mask_ref, meff_ref, mx_ref):
    """M_eff = 1.0 on train nodes else sigmoid(M);  MX = M_eff * x."""
    mask = mask_ref[...]                                   # (TM, 1) float {0,1}
    sig = 1.0 / (1.0 + jnp.exp(-m_ref[...]))               # explicit sigmoid
    m_eff = jnp.where(mask > 0.5, 1.0, sig)
    meff_ref[...] = m_eff.astype(meff_ref.dtype)
    mx_ref[...] = (m_eff * x_ref[...]).astype(mx_ref.dtype)


def _pagcn_kernel(adj_sp_ref, adj_nn_ref, meff_ref, mx_ref, w_ref, out_ref):
    """Fused per row-tile: AM^-1 gate, both aggregation matmuls, projection, ELU."""
    am = jnp.dot(adj_nn_ref[...], meff_ref[...],
                 preferred_element_type=jnp.float32)       # (TM, F)
    am_inv = jnp.where(am == 0.0, 0.0, 1.0 / am)           # pow(-1) with inf -> 0
    s = jnp.dot(adj_sp_ref[...], mx_ref[...],
                preferred_element_type=jnp.float32)        # (TM, F)
    h = s * am_inv
    hp = jnp.dot(h, w_ref[...], preferred_element_type=jnp.float32)  # (TM, O)
    out_ref[...] = jnp.where(hp > 0.0, hp, jnp.exp(hp) - 1.0).astype(out_ref.dtype)


def pagcn_forward(x, sp_adj, non_norm_adj, M, W, train_mask, *, tm=256):
    N, F = x.shape
    O = W.shape[1]
    assert sp_adj.shape == (N, N) and non_norm_adj.shape == (N, N)
    assert M.shape == (N, F) and W.shape == (F, O)

    tm = max(8, _round_up(tm, 8))          # sublane-aligned row tile
    n_pad = _round_up(N, tm)               # pad instead of asserting N % tm == 0
    f_pad = _round_up(F, 128)              # lane-dense contraction / feature dim
    o_pad = _round_up(O, 128)              # lane-dense output dim

    # VMEM budget (f32, default double-buffering): resident M_eff + MX + W
    # ~= 2*(2*n_pad*f_pad + f_pad*o_pad)*4 B, adjacency tiles ~= 2*2*tm*n_pad*4 B.
    # Keep under the ~32 MiB scoped default (v7x physical = 64 MiB); for large
    # graphs tile the contraction dim with an extra "arbitrary" grid axis.

    pad2 = lambda a, r, c: jnp.pad(a, ((0, r - a.shape[0]), (0, c - a.shape[1])))
    x_p = pad2(x.astype(jnp.float32), n_pad, f_pad)
    m_p = pad2(M.astype(jnp.float32), n_pad, f_pad)
    w_p = pad2(W.astype(jnp.float32), f_pad, o_pad)
    sp_p = pad2(sp_adj.astype(jnp.float32), n_pad, n_pad)
    nn_p = pad2(non_norm_adj.astype(jnp.float32), n_pad, n_pad)
    mask_p = pad2(train_mask.astype(jnp.float32).reshape(N, 1), n_pad, 1)

    grid = (n_pad // tm,)

    # Stage 1: elementwise gate on row tiles.
    m_eff, mx = pl.pallas_call(
        _prep_kernel,
        out_shape=(
            jax.ShapeDtypeStruct((n_pad, f_pad), jnp.float32),
            jax.ShapeDtypeStruct((n_pad, f_pad), jnp.float32),
        ),
        grid_spec=pltpu.PrefetchScalarGridSpec(
            num_scalar_prefetch=0,
            grid=grid,
            in_specs=[
                pl.BlockSpec((tm, f_pad), lambda i: (i, 0)),   # M row tile
                pl.BlockSpec((tm, f_pad), lambda i: (i, 0)),   # x row tile
                pl.BlockSpec((tm, 1), lambda i: (i, 0)),       # train mask column
            ],
            out_specs=[
                pl.BlockSpec((tm, f_pad), lambda i: (i, 0)),
                pl.BlockSpec((tm, f_pad), lambda i: (i, 0)),
            ],
        ),
        compiler_params=pltpu.CompilerParams(dimension_semantics=("parallel",)),
    )(m_p, x_p, mask_p)

    # Stage 2: fused GCN layer over row tiles of the adjacencies.
    flops = 2 * (2 * n_pad * n_pad * f_pad) + 2 * n_pad * f_pad * o_pad
    bytes_accessed = 4 * (2 * n_pad * n_pad + 3 * n_pad * f_pad
                          + f_pad * o_pad + n_pad * o_pad)
    out_p = pl.pallas_call(
        _pagcn_kernel,
        out_shape=jax.ShapeDtypeStruct((n_pad, o_pad), jnp.float32),
        grid_spec=pltpu.PrefetchScalarGridSpec(
            num_scalar_prefetch=0,
            grid=grid,
            in_specs=[
                pl.BlockSpec((tm, n_pad), lambda i: (i, 0)),     # sp_adj row tile
                pl.BlockSpec((tm, n_pad), lambda i: (i, 0)),     # non_norm_adj row tile
                pl.BlockSpec((n_pad, f_pad), lambda i: (0, 0)),  # M_eff (resident)
                pl.BlockSpec((n_pad, f_pad), lambda i: (0, 0)),  # MX (resident)
                pl.BlockSpec((f_pad, o_pad), lambda i: (0, 0)),  # W (resident)
            ],
            out_specs=pl.BlockSpec((tm, o_pad), lambda i: (i, 0)),
        ),
        compiler_params=pltpu.CompilerParams(dimension_semantics=("parallel",)),
        cost_estimate=pl.CostEstimate(
            flops=flops,
            transcendentals=n_pad * o_pad,
            bytes_accessed=bytes_accessed,
        ),
    )(sp_p, nn_p, m_eff, mx, w_p)

    return out_p[:N, :O]


def _ref_forward(x, sp_adj, non_norm_adj, M, W, train_mask):
    """Pure-JAX reference mirroring the PyTorch forward (eval mode)."""
    sig = 1.0 / (1.0 + jnp.exp(-M))
    m_eff = jnp.where(train_mask[:, None], 1.0, sig)
    am = non_norm_adj @ m_eff
    am_inv = jnp.where(am == 0.0, 0.0, 1.0 / am)
    h = (sp_adj @ (m_eff * x)) * am_inv
    hp = h @ W
    return jnp.where(hp > 0.0, hp, jnp.exp(hp) - 1.0)


if __name__ == "__main__":
    # Small shapes consistent with PaGCNLayer(in_features -> out_features) on an
    # N-node graph; N/F/O deliberately not multiples of 8/128 to exercise padding.
    N, F, O = 200, 48, 24

    key = jax.random.PRNGKey(0)
    kx, km, kw, ka = jax.random.split(key, 4)

    x = jax.random.normal(kx, (N, F), dtype=jnp.float32)
    M = jax.random.normal(km, (N, F), dtype=jnp.float32) * 0.5
    # xavier_uniform with gain sqrt(2): U(-a, a), a = gain * sqrt(6 / (fan_in + fan_out))
    a = jnp.sqrt(2.0) * jnp.sqrt(6.0 / (F + O))
    W = jax.random.uniform(kw, (F, O), jnp.float32, -a, a)

    # Symmetric binary adjacency with self loops (non-normalized) + row-normalized copy.
    edges = (jax.random.uniform(ka, (N, N)) < 0.05).astype(jnp.float32)
    adj = jnp.maximum(edges, edges.T)
    non_norm_adj = jnp.minimum(adj + jnp.eye(N, dtype=jnp.float32), 1.0)
    deg = non_norm_adj.sum(axis=1, keepdims=True)
    sp_adj = non_norm_adj / deg

    train_mask = jnp.arange(N) < 40        # nodes with fixed (observed) features

    out = pagcn_forward(x, sp_adj, non_norm_adj, M, W, train_mask, tm=128)
    jax.block_until_ready(out)

    out_ref = _ref_forward(x, sp_adj, non_norm_adj, M, W, train_mask)
    assert out.shape == (N, O)
    assert jnp.allclose(out, out_ref, atol=1e-3, rtol=1e-3), float(
        jnp.max(jnp.abs(out - out_ref)))

    print("KERNEL_OK")
</pallas_src>

<mosaic_0001>
module attributes {stable_mosaic.version = 11 : i64} {
  func.func @_prep_kernel(%arg0: i32, %arg1: memref<128x128xf32, #tpu.memory_space<vmem>>, %arg2: memref<128x128xf32, #tpu.memory_space<vmem>>, %arg3: memref<128x1xf32, #tpu.memory_space<vmem>>, %arg4: memref<128x128xf32, #tpu.memory_space<vmem>>, %arg5: memref<128x128xf32, #tpu.memory_space<vmem>>) attributes {dimension_semantics = [#tpu.dimension_semantics<parallel>], iteration_bounds = array<i64: 2>, scalar_prefetch = 0 : i64, scratch_operands = 0 : i64, tpu.core_type = #tpu.core_type<tc>, window_params = [{transform_indices = @transform_0, window_bounds = array<i64: 128, 128>}, {transform_indices = @transform_1, window_bounds = array<i64: 128, 128>}, {transform_indices = @transform_2, window_bounds = array<i64: 128, 1>}, {transform_indices = @transform_3, window_bounds = array<i64: 128, 128>}, {transform_indices = @transform_4, window_bounds = array<i64: 128, 128>}]} {
    %c0 = arith.constant 0 : index
    %c0_0 = arith.constant 0 : index
    %0 = vector.load %arg3[%c0, %c0_0] : memref<128x1xf32, #tpu.memory_space<vmem>>, vector<128x1xf32>
    %c0_1 = arith.constant 0 : index
    %c0_2 = arith.constant 0 : index
    %1 = vector.load %arg1[%c0_1, %c0_2] : memref<128x128xf32, #tpu.memory_space<vmem>>, vector<128x128xf32>
    %cst = arith.constant 0.000000e+00 : f32
    %2 = vector.broadcast %cst : f32 to vector<128x128xf32>
    %3 = arith.subf %2, %1 : vector<128x128xf32>
    %4 = math.exp %3 : vector<128x128xf32>
    %cst_3 = arith.constant 1.000000e+00 : f32
    %5 = vector.broadcast %cst_3 : f32 to vector<128x128xf32>
    %6 = arith.addf %5, %4 : vector<128x128xf32>
    %cst_4 = arith.constant 1.000000e+00 : f32
    %7 = vector.broadcast %cst_4 : f32 to vector<128x128xf32>
    %8 = arith.divf %7, %6 : vector<128x128xf32>
    %cst_5 = arith.constant 5.000000e-01 : f32
    %9 = vector.broadcast %cst_5 : f32 to vector<128x1xf32>
    %10 = arith.cmpf ogt, %0, %9 : vector<128x1xf32>
    %cst_6 = arith.constant 1.000000e+00 : f32
    %11 = vector.shape_cast %10 : vector<128x1xi1> to vector<128x1xi1>
    %12 = vector.broadcast %11 : vector<128x1xi1> to vector<128x128xi1>
    %13 = vector.broadcast %cst_6 : f32 to vector<128x128xf32>
    %14 = arith.select %12, %13, %8 : vector<128x128xi1>, vector<128x128xf32>
    %c0_7 = arith.constant 0 : index
    %c0_8 = arith.constant 0 : index
    %15 = vector.load %arg4[%c0_7, %c0_8] : memref<128x128xf32, #tpu.memory_space<vmem>>, vector<128x128xf32>
    tpu.vector_store %arg4[%c0_7, %c0_8], %14 {strides = array<i32>} : memref<128x128xf32, #tpu.memory_space<vmem>>, vector<128x128xf32>,
    %c0_9 = arith.constant 0 : index
    %c0_10 = arith.constant 0 : index
    %16 = vector.load %arg2[%c0_9, %c0_10] : memref<128x128xf32, #tpu.memory_space<vmem>>, vector<128x128xf32>
    %17 = arith.mulf %14, %16 : vector<128x128xf32>
    %c0_11 = arith.constant 0 : index
    %c0_12 = arith.constant 0 : index
    %18 = vector.load %arg5[%c0_11, %c0_12] : memref<128x128xf32, #tpu.memory_space<vmem>>, vector<128x128xf32>
    tpu.vector_store %arg5[%c0_11, %c0_12], %17 {strides = array<i32>} : memref<128x128xf32, #tpu.memory_space<vmem>>, vector<128x128xf32>,
    return
  }
  func.func @transform_0(%arg0: i32) -> (i32, i32) {
    %c0_i32 = arith.constant 0 : i32
    %c0_i32_0 = arith.constant 0 : i32
    return %arg0, %c0_i32 : i32, i32
  }
  func.func @transform_1(%arg0: i32) -> (i32, i32) {
    %c0_i32 = arith.constant 0 : i32
    %c0_i32_0 = arith.constant 0 : i32
    return %arg0, %c0_i32 : i32, i32
  }
  func.func @transform_2(%arg0: i32) -> (i32, i32) {
    %c0_i32 = arith.constant 0 : i32
    %c0_i32_0 = arith.constant 0 : i32
    return %arg0, %c0_i32 : i32, i32
  }
  func.func @transform_3(%arg0: i32) -> (i32, i32) {
    %c0_i32 = arith.constant 0 : i32
    %c0_i32_0 = arith.constant 0 : i32
    return %arg0, %c0_i32 : i32, i32
  }
  func.func @transform_4(%arg0: i32) -> (i32, i32) {
    %c0_i32 = arith.constant 0 : i32
    %c0_i32_0 = arith.constant 0 : i32
    return %arg0, %c0_i32 : i32, i32
  }
}

</mosaic_0001>

<llo_original>
// kernel: tpu_custom_call.1
$region0: #{tpu_custom_call.1}
  #allocation0 [shape = 'u32[]', space=smem, size = 0x4, offset = 0x4, fixed_abs, tag = 'smem constant byte address 0x4 - core index']
  #allocation1 [shape = 'u32[144,128]{1,0:T(1,128)}', space=vmem, size = 0x12000, scoped, tag = 'internal scratch']
  %s0 = inlined_call_operand.vmem [shape: f32[256,128], index: 0, kind: input, shape index: {}]
  %s1 = inlined_call_operand.hbm [shape: f32[256,128], index: 1, kind: input, shape index: {}]
  %s2 = inlined_call_operand.vmem [shape: f32[256,1], index: 2, kind: input, shape index: {}]
  %s3 = inlined_call_operand.hbm [shape: f32[256,128], index: 3, kind: output, shape index: {0}]
  %s4 = inlined_call_operand.hbm [shape: f32[256,128], index: 4, kind: output, shape index: {1}]
  %5 = xla_tuple %s3, %s4
  %s6 = sld [smem:[#allocation0]]
  $region57: #{tpu_custom_call.1} parent=0
    _
  %s8 = ssub.s32 1, %s6
  %s9 = scalar_select 0, %s8, %s6
  $region1: #{tpu_custom_call.1} parent=0
    #allocation2 [shape = 'u8[131072]{0}', space=vmem, size = 0x20000, scoped, tag = 'input window, operand 1']
    #allocation3 [shape = 's32[2]{0}', space=sflag, size = 0x8, scoped, tag = 'scoped memory for tpu_custom_call.1']
    #allocation4 [shape = 's32[2]{0}', space=sflag, size = 0x8, scoped, tag = 'scoped memory for tpu_custom_call.1']
    #allocation5 [shape = 'u8[131072]{0}', space=vmem, size = 0x20000, scoped, tag = 'output window, operand 0']
    #allocation6 [shape = 'u8[131072]{0}', space=vmem, size = 0x20000, scoped, tag = 'output window, operand 1']
    #allocation7 [shape = 's32[2]{0}', space=sflag, size = 0x8, scoped, tag = 'scoped memory for tpu_custom_call.1']
    %10 = vsyncpa [#allocation3], 0
    %s11 = scalar_lea.sflag [#allocation3], 1
    %12 = vsyncpa %s11, 0
    %13 = vsyncpa [#allocation4], 0
    %s14 = scalar_lea.sflag [#allocation4], 1
    %15 = vsyncpa %s14, 0
    %16 = vsyncpa [#allocation7], 0
    %s17 = scalar_lea.sflag [#allocation7], 1
    %18 = vsyncpa %s17, 0
    loop: start=0, step=1, limit=4
    $region2: #{tpu_custom_call.1} parent=1 // loop_pre_header
      _
    $region3: #{tpu_custom_call.1} parent=1 // loop_header
      %s20 = sphi 0, %s24
      %p21 = scmp.ge.s32.totalorder %s20, 4
      %s30 = sphi 0, %s32
      %s33 = sphi 0, %s30
      %s34 = sphi 0, %s33
      %s50 = sphi 0, %s34
      %s56 = sphi 0, %s58
      %s59 = sphi 0, %s56
      %s60 = sphi 0, %s59
      %s76 = sphi 0, %s60
      %s82 = sphi 0, %s84
      %s85 = sphi 0, %s82
      %s86 = sphi 0, %s85
      %s102 = sphi 0, %s86
      %s108 = sphi 0, %s110
      %s111 = sphi 0, %s108
      %s112 = sphi 0, %s111
      %s128 = sphi 0, %s112
      %s134 = sphi 0, %s136
      %s137 = sphi 0, %s134
      %s138 = sphi 0, %s137
      %s154 = sphi 0, %s138
    $region4: #{tpu_custom_call.1} parent=1 // loop_header_branch
      %23 = sbr.rel (%p21) target = $region8
    $region5: #{tpu_custom_call.1} parent=1 // loop_body
      %s25 = ssub.s32 %s20, 1
      %s26 = ssub.s32 %s20, 2
      %s27 = sadd.s32 %s20, 1
      %s28 = ssub.s32 %s20, %s27
      %p29 = scmp.eq.s32.totalorder %s28, 0
      %s31 = sadd.s32 %s30, 1
      %s32 = scalar_select %p29, %s30, %s31
      %p35 = pneg %p29
      %p36 = scmp.eq.s32.totalorder %s20, 1
      %p37 = por %p35, %p36
      %p38 = scmp.ne.s32.totalorder %s30, %s33
      %p39 = scmp.eq.s32.totalorder %s20, 0
      %p40 = por %p38, %p39
      %p41 = scmp.ne.s32.totalorder %s30, %s33
      %p42 = scmp.eq.s32.totalorder %s25, 1
      %p43 = por %p41, %p42
      %p44 = scmp.ne.s32.totalorder %s33, %s34
      %p45 = scmp.eq.s32.totalorder %s25, 0
      %p46 = por %p44, %p45
      %p47 = scmp.ne.s32.totalorder %s33, %s34
      %p48 = scmp.eq.s32.totalorder %s26, 1
      %p49 = por %p47, %p48
      %p51 = scmp.ne.s32.totalorder %s34, %s50
      %p52 = scmp.eq.s32.totalorder %s26, 0
      %p53 = por %p51, %p52
      %s54 = ssub.s32 %s20, %s27
      %p55 = scmp.eq.s32.totalorder %s54, 0
      %s57 = sadd.s32 %s56, 1
      %s58 = scalar_select %p55, %s56, %s57
      %p61 = pneg %p55
      %p62 = scmp.eq.s32.totalorder %s20, 1
      %p63 = por %p61, %p62
      %p64 = scmp.ne.s32.totalorder %s56, %s59
      %p65 = scmp.eq.s32.totalorder %s20, 0
      %p66 = por %p64, %p65
      %p67 = scmp.ne.s32.totalorder %s56, %s59
      %p68 = scmp.eq.s32.totalorder %s25, 1
      %p69 = por %p67, %p68
      %p70 = scmp.ne.s32.totalorder %s59, %s60
      %p71 = scmp.eq.s32.totalorder %s25, 0
      %p72 = por %p70, %p71
      %p73 = scmp.ne.s32.totalorder %s59, %s60
      %p74 = scmp.eq.s32.totalorder %s26, 1
      %p75 = por %p73, %p74
      %p77 = scmp.ne.s32.totalorder %s60, %s76
      %p78 = scmp.eq.s32.totalorder %s26, 0
      %p79 = por %p77, %p78
      %s80 = ssub.s32 %s20, %s27
      %p81 = scmp.eq.s32.totalorder %s80, 0
      %s83 = sadd.s32 %s82, 1
      %s84 = scalar_select %p81, %s82, %s83
      %p87 = pneg %p81
      %p88 = scmp.eq.s32.totalorder %s20, 1
      %p89 = por %p87, %p88
      %p90 = scmp.ne.s32.totalorder %s82, %s85
      %p91 = scmp.eq.s32.totalorder %s20, 0
      %p92 = por %p90, %p91
      %p93 = scmp.ne.s32.totalorder %s82, %s85
      %p94 = scmp.eq.s32.totalorder %s25, 1
      %p95 = por %p93, %p94
      %p96 = scmp.ne.s32.totalorder %s85, %s86
      %p97 = scmp.eq.s32.totalorder %s25, 0
      %p98 = por %p96, %p97
      %p99 = scmp.ne.s32.totalorder %s85, %s86
      %p100 = scmp.eq.s32.totalorder %s26, 1
      %p101 = por %p99, %p100
      %p103 = scmp.ne.s32.totalorder %s86, %s102
      %p104 = scmp.eq.s32.totalorder %s26, 0
      %p105 = por %p103, %p104
      %s106 = ssub.s32 %s20, %s27
      %p107 = scmp.eq.s32.totalorder %s106, 0
      %s109 = sadd.s32 %s108, 1
      %s110 = scalar_select %p107, %s108, %s109
      %p113 = pneg %p107
      %p114 = scmp.eq.s32.totalorder %s20, 1
      %p115 = por %p113, %p114
      %p116 = scmp.ne.s32.totalorder %s108, %s111
      %p117 = scmp.eq.s32.totalorder %s20, 0
      %p118 = por %p116, %p117
      %p119 = scmp.ne.s32.totalorder %s108, %s111
      %p120 = scmp.eq.s32.totalorder %s25, 1
      %p121 = por %p119, %p120
      %p122 = scmp.ne.s32.totalorder %s111, %s112
      %p123 = scmp.eq.s32.totalorder %s25, 0
      %p124 = por %p122, %p123
      %p125 = scmp.ne.s32.totalorder %s111, %s112
      %p126 = scmp.eq.s32.totalorder %s26, 1
      %p127 = por %p125, %p126
      %p129 = scmp.ne.s32.totalorder %s112, %s128
      %p130 = scmp.eq.s32.totalorder %s26, 0
      %p131 = por %p129, %p130
      %s132 = ssub.s32 %s20, %s27
      %p133 = scmp.eq.s32.totalorder %s132, 0
      %s135 = sadd.s32 %s134, 1
      %s136 = scalar_select %p133, %s134, %s135
      %p139 = pneg %p133
      %p140 = scmp.eq.s32.totalorder %s20, 1
      %p141 = por %p139, %p140
      %p142 = scmp.ne.s32.totalorder %s134, %s137
      %p143 = scmp.eq.s32.totalorder %s20, 0
      %p144 = por %p142, %p143
      %p145 = scmp.ne.s32.totalorder %s134, %s137
      %p146 = scmp.eq.s32.totalorder %s25, 1
      %p147 = por %p145, %p146
      %p148 = scmp.ne.s32.totalorder %s137, %s138
      %p149 = scmp.eq.s32.totalorder %s25, 0
      %p150 = por %p148, %p149
      %p151 = scmp.ne.s32.totalorder %s137, %s138
      %p152 = scmp.eq.s32.totalorder %s26, 1
      %p153 = por %p151, %p152
      %p155 = scmp.ne.s32.totalorder %s138, %s154
      %p156 = scmp.eq.s32.totalorder %s26, 0
      %p157 = por %p155, %p156
      %p158 = scmp.le.s32.totalorder 1, %s20
      %p159 = scmp.lt.s32.totalorder %s20, 3
      %p160 = pnand %p158, %p159
      %p161 = pneg %p160
      // Predicated region
      $region9: #{tpu_custom_call.1} parent=5 // pred_check
        _
      $region10: #{tpu_custom_call.1} parent=5 // pred_check_branch
        %163 = sbr.rel (%p160) target = $region12
      $region11: #{tpu_custom_call.1} parent=5 // pred_region
        %s164 = ssub.s32 %s20, 1
      $region12: #{tpu_custom_call.1} parent=5 // pred_fallthru
        _
      %p165 = scmp.lt.s32.totalorder %s20, 2
      // Predicated region
      $region13: #{tpu_custom_call.1} parent=5 // pred_check
        %p166 = pneg %p165
      $region14: #{tpu_custom_call.1} parent=5 // pred_check_branch
        %168 = sbr.rel (%p166) target = $region16
      $region15: #{tpu_custom_call.1} parent=5 // pred_region
        // Predicated region
        $region17: #{tpu_custom_call.1} parent=15 // pred_check
          %p169 = pneg %p40
        $region18: #{tpu_custom_call.1} parent=15 // pred_check_branch
          %171 = sbr.rel (%p169) target = $region20
        $region19: #{tpu_custom_call.1} parent=15 // pred_region
          %s172 = smul.u32 16, %s20
          %p173 = scmp.lt.s32.totalorder %s172, 31
          %s174 = scalar_select %p173, %s172, 31
          %s175 = smul.addr %s174, 8
          %s176 = scalar_lea.vmem %s0, %s175
          %s177 = smul.u32 16, %s20
        $region20: #{tpu_custom_call.1} parent=15 // pred_fallthru
          _
        // Predicated region
        $region21: #{tpu_custom_call.1} parent=15 // pred_check
          %p178 = pneg %p66
        $region22: #{tpu_custom_call.1} parent=15 // pred_check_branch
          %180 = sbr.rel (%p178) target = $region24
        $region23: #{tpu_custom_call.1} parent=15 // pred_region
          %s181 = sand.u32 %s56, 1
          %s182 = scalar_lea.sflag [#allocation3], %s181
          %s183 = sand.u32 %s56, 1
          %s184 = smul.addr %s183, 128
          %s185 = scalar_lea.vmem [#allocation2], %s184
          %s186 = smul.u32 16, %s20
          %s188 = ssub.s32 2048, 2048
          %189 = vsyncadd %s182, %s188
          %s190 = smul.addr %s186, 128
          %s191 = scalar_lea.hbm %s1, %s190
          %s192 = sshll.u32 %s185, 4
          %s193 = int_to_ptr.vmem [resolvable:$true] %s192
          %198 = dma.hbm_to_vmem [thread:$0]  %s191, 2048, %s193, %s182, 128, 128, 8
        $region24: #{tpu_custom_call.1} parent=15 // pred_fallthru
          _
        // Predicated region
        $region25: #{tpu_custom_call.1} parent=15 // pred_check
          %p199 = pneg %p92
        $region26: #{tpu_custom_call.1} parent=15 // pred_check_branch
          %201 = sbr.rel (%p199) target = $region28
        $region27: #{tpu_custom_call.1} parent=15 // pred_region
          %s202 = smul.u32 16, %s20
          %p203 = scmp.lt.s32.totalorder %s202, 31
          %s204 = scalar_select %p203, %s202, 31
          %s205 = smul.addr %s204, 8
          %s206 = scalar_lea.vmem %s2, %s205
          %s207 = smul.u32 16, %s20
        $region28: #{tpu_custom_call.1} parent=15 // pred_fallthru
          _
      $region16: #{tpu_custom_call.1} parent=5 // pred_fallthru
        _
      %p208 = scmp.le.s32.totalorder 1, %s20
      %p209 = scmp.lt.s32.totalorder %s20, 3
      %p210 = pnand %p208, %p209
      %p211 = pneg %p210
      // Predicated region
      $region29: #{tpu_custom_call.1} parent=5 // pred_check
        _
      $region30: #{tpu_custom_call.1} parent=5 // pred_check_branch
        %213 = sbr.rel (%p210) target = $region32
      $region31: #{tpu_custom_call.1} parent=5 // pred_region
        %s214 = ssub.s32 %s20, 1
        %s215 = sand.u32 %s59, 1
        %s216 = scalar_lea.sflag [#allocation3], %s215
        %s217 = sand.u32 %s59, 1
        %s218 = smul.addr %s217, 128
        %s219 = scalar_lea.vmem [#allocation2], %s218
        // Predicated region
        $region33: #{tpu_custom_call.1} parent=31 // pred_check
          %p220 = pneg %p72
        $region34: #{tpu_custom_call.1} parent=31 // pred_check_branch
          %222 = sbr.rel (%p220) target = $region36
        $region35: #{tpu_custom_call.1} parent=31 // pred_region
          %223 = dma.done %s216, 2048
        $region36: #{tpu_custom_call.1} parent=31 // pred_fallthru
          _
        %s224 = smul.u32 16, %s25
        %p225 = scmp.lt.s32.totalorder %s224, 31
        %s226 = scalar_select %p225, %s224, 31
        %s227 = smul.addr %s226, 8
        %s228 = scalar_lea.vmem %s0, %s227
        %p229 = pneg %p46
        %p230 = pneg %p43
        %s231 = sand.u32 %s59, 1
        %s232 = scalar_lea.sflag [#allocation3], %s231
        %s233 = sand.u32 %s59, 1
        %s234 = smul.addr %s233, 128
        %s235 = scalar_lea.vmem [#allocation2], %s234
        %p236 = pneg %p72
        %p237 = pneg %p69
        %s238 = smul.u32 16, %s25
        %p239 = scmp.lt.s32.totalorder %s238, 31
        %s240 = scalar_select %p239, %s238, 31
        %s241 = smul.addr %s240, 8
        %s242 = scalar_lea.vmem %s2, %s241
        %p243 = pneg %p98
        %p244 = pneg %p95
        %p245 = pneg %p124
        %p246 = pneg %p121
        %s247 = sand.u32 %s111, 1
        %s248 = scalar_lea.sflag [#allocation4], %s247
        %s249 = sand.u32 %s111, 1
        %s250 = smul.addr %s249, 128
        %s251 = scalar_lea.vmem [#allocation5], %s250
        %p252 = pneg %p150
        %p253 = pneg %p147
        %s254 = sand.u32 %s137, 1
        %s255 = scalar_lea.sflag [#allocation7], %s254
        %s256 = sand.u32 %s137, 1
        %s257 = smul.addr %s256, 128
        %s258 = scalar_lea.vmem [#allocation6], %s257
        %s259 = smul.u32 16, %s25
        %p260 = scmp.lt.s32.totalorder %s259, 31
        %s261 = scalar_select %p260, %s259, 31
        %s262 = smul.addr %s261, 8
        %s263 = scalar_lea.vmem %s0, %s262
        %s264 = smul.u32 16, %s25
        %s265 = smul.u32 16, %s25
        %s266 = smul.u32 16, %s25
        %p267 = scmp.lt.s32.totalorder %s266, 31
        %s268 = scalar_select %p267, %s266, 31
        %s269 = smul.addr %s268, 8
        %s270 = scalar_lea.vmem %s2, %s269
        %s271 = smul.u32 16, %s25
        %s272 = smul.u32 16, %s25
        %s273 = smul.u32 16, %s25
        %v274 = vld [vmem:[%s270] sm:$0xff]
        %v275 = vld [vmem:[%s270 + $0x8] sm:$0xff]
        %v276 = vld [vmem:[%s270 + $0x10] sm:$0xff]
        %v277 = vld [vmem:[%s270 + $0x18] sm:$0xff]
        %v278 = vld [vmem:[%s270 + $0x20] sm:$0xff]
        %v279 = vld [vmem:[%s270 + $0x28] sm:$0xff]
        %v280 = vld [vmem:[%s270 + $0x30] sm:$0xff]
        %v281 = vld [vmem:[%s270 + $0x38] sm:$0xff]
        %v282 = vld [vmem:[%s270 + $0x40] sm:$0xff]
        %v283 = vld [vmem:[%s270 + $0x48] sm:$0xff]
        %v284 = vld [vmem:[%s270 + $0x50] sm:$0xff]
        %v285 = vld [vmem:[%s270 + $0x58] sm:$0xff]
        %v286 = vld [vmem:[%s270 + $0x60] sm:$0xff]
        %v287 = vld [vmem:[%s270 + $0x68] sm:$0xff]
        %v288 = vld [vmem:[%s270 + $0x70] sm:$0xff]
        %v289 = vld [vmem:[%s270 + $0x78] sm:$0xff]
        %v290 = vld [vmem:[%s263] sm:$0xff]
        %v291 = vld [vmem:[%s263 + $0x8] sm:$0xff]
        %v292 = vld [vmem:[%s263 + $0x10] sm:$0xff]
        %v293 = vld [vmem:[%s263 + $0x18] sm:$0xff]
        %v294 = vld [vmem:[%s263 + $0x20] sm:$0xff]
        %v295 = vld [vmem:[%s263 + $0x28] sm:$0xff]
        %v296 = vld [vmem:[%s263 + $0x30] sm:$0xff]
        %v297 = vld [vmem:[%s263 + $0x38] sm:$0xff]
        %v298 = vld [vmem:[%s263 + $0x40] sm:$0xff]
        %v299 = vld [vmem:[%s263 + $0x48] sm:$0xff]
        %v300 = vld [vmem:[%s263 + $0x50] sm:$0xff]
        %v301 = vld [vmem:[%s263 + $0x58] sm:$0xff]
        %v302 = vld [vmem:[%s263 + $0x60] sm:$0xff]
        %v303 = vld [vmem:[%s263 + $0x68] sm:$0xff]
        %v304 = vld [vmem:[%s263 + $0x70] sm:$0xff]
        %v305 = vld [vmem:[%s263 + $0x78] sm:$0xff]
        %v306 = vsub.f32 0.0, %v290
        %v307 = vsub.f32 0.0, %v291
        %v308 = vsub.f32 0.0, %v292
        %v309 = vsub.f32 0.0, %v293
        %v310 = vsub.f32 0.0, %v294
        %v311 = vsub.f32 0.0, %v295
        %v312 = vsub.f32 0.0, %v296
        %v313 = vsub.f32 0.0, %v297
        %v314 = vsub.f32 0.0, %v298
        %v315 = vsub.f32 0.0, %v299
        %v316 = vsub.f32 0.0, %v300
        %v317 = vsub.f32 0.0, %v301
        %v318 = vsub.f32 0.0, %v302
        %v319 = vsub.f32 0.0, %v303
        %v320 = vsub.f32 0.0, %v304
        %v321 = vsub.f32 0.0, %v305
        %v322 = vmul.f32 %v306, 1.442695
        %v323 = vpow.pop %v322
        %v324 = vmul.f32 %v307, 1.442695
        %v325 = vpow.pop %v324
        %v326 = vmul.f32 %v308, 1.442695
        %v327 = vpow.pop %v326
        %v328 = vmul.f32 %v309, 1.442695
        %v329 = vpow.pop %v328
        %v330 = vmul.f32 %v310, 1.442695
        %v331 = vpow.pop %v330
        %v332 = vmul.f32 %v311, 1.442695
        %v333 = vpow.pop %v332
        %v334 = vmul.f32 %v312, 1.442695
        %v335 = vpow.pop %v334
        %v336 = vmul.f32 %v313, 1.442695
        %v337 = vpow.pop %v336
        %v338 = vmul.f32 %v314, 1.442695
        %v339 = vpow.pop %v338
        %v340 = vmul.f32 %v315, 1.442695
        %v341 = vpow.pop %v340
        %v342 = vmul.f32 %v316, 1.442695
        %v343 = vpow.pop %v342
        %v344 = vmul.f32 %v317, 1.442695
        %v345 = vpow.pop %v344
        %v346 = vmul.f32 %v318, 1.442695
        %v347 = vpow.pop %v346
        %v348 = vmul.f32 %v319, 1.442695
        %v349 = vpow.pop %v348
        %v350 = vmul.f32 %v320, 1.442695
        %v351 = vpow.pop %v350
        %v352 = vmul.f32 %v321, 1.442695
        %v353 = vpow.pop %v352
        %v354 = vadd.f32 %v323, 1.0
        %v355 = vadd.f32 %v325, 1.0
        %v356 = vadd.f32 %v327, 1.0
        %v357 = vadd.f32 %v329, 1.0
        %v358 = vadd.f32 %v331, 1.0
        %v359 = vadd.f32 %v333, 1.0
        %v360 = vadd.f32 %v335, 1.0
        %v361 = vadd.f32 %v337, 1.0
        %v362 = vadd.f32 %v339, 1.0
        %v363 = vadd.f32 %v341, 1.0
        %v364 = vadd.f32 %v343, 1.0
        %v365 = vadd.f32 %v345, 1.0
        %v366 = vadd.f32 %v347, 1.0
        %v367 = vadd.f32 %v349, 1.0
        %v368 = vadd.f32 %v351, 1.0
        %v369 = vadd.f32 %v353, 1.0
        %v370 = vrcp.pop %v354
        %v371 = vmul.f32 1.0, %v370
        %v372 = vrcp.pop %v355
        %v373 = vmul.f32 1.0, %v372
        %v374 = vrcp.pop %v356
        %v375 = vmul.f32 1.0, %v374
        %v376 = vrcp.pop %v357
        %v377 = vmul.f32 1.0, %v376
        %v378 = vrcp.pop %v358
        %v379 = vmul.f32 1.0, %v378
        %v380 = vrcp.pop %v359
        %v381 = vmul.f32 1.0, %v380
        %v382 = vrcp.pop %v360
        %v383 = vmul.f32 1.0, %v382
        %v384 = vrcp.pop %v361
        %v385 = vmul.f32 1.0, %v384
        %v386 = vrcp.pop %v362
        %v387 = vmul.f32 1.0, %v386
        %v388 = vrcp.pop %v363
        %v389 = vmul.f32 1.0, %v388
        %v390 = vrcp.pop %v364
        %v391 = vmul.f32 1.0, %v390
        %v392 = vrcp.pop %v365
        %v393 = vmul.f32 1.0, %v392
        %v394 = vrcp.pop %v366
        %v395 = vmul.f32 1.0, %v394
        %v396 = vrcp.pop %v367
        %v397 = vmul.f32 1.0, %v396
        %v398 = vrcp.pop %v368
        %v399 = vmul.f32 1.0, %v398
        %v400 = vrcp.pop %v369
        %v401 = vmul.f32 1.0, %v400
        %vm402 = vcmp.gt.f32.partialorder %v274, 0.5
        %vm403 = vcmp.gt.f32.partialorder %v275, 0.5
        %vm404 = vcmp.gt.f32.partialorder %v276, 0.5
        %vm405 = vcmp.gt.f32.partialorder %v277, 0.5
        %vm406 = vcmp.gt.f32.partialorder %v278, 0.5
        %vm407 = vcmp.gt.f32.partialorder %v279, 0.5
        %vm408 = vcmp.gt.f32.partialorder %v280, 0.5
        %vm409 = vcmp.gt.f32.partialorder %v281, 0.5
        %vm410 = vcmp.gt.f32.partialorder %v282, 0.5
        %vm411 = vcmp.gt.f32.partialorder %v283, 0.5
        %vm412 = vcmp.gt.f32.partialorder %v284, 0.5
        %vm413 = vcmp.gt.f32.partialorder %v285, 0.5
        %vm414 = vcmp.gt.f32.partialorder %v286, 0.5
        %vm415 = vcmp.gt.f32.partialorder %v287, 0.5
        %vm416 = vcmp.gt.f32.partialorder %v288, 0.5
        %vm417 = vcmp.gt.f32.partialorder %v289, 0.5
        %v418 = vsel %vm402, 1, 0
        %v419 = vsel %vm403, 1, 0
        %v420 = vsel %vm404, 1, 0
        %v421 = vsel %vm405, 1, 0
        %v422 = vsel %vm406, 1, 0
        %v423 = vsel %vm407, 1, 0
        %v424 = vsel %vm408, 1, 0
        %v425 = vsel %vm409, 1, 0
        %v426 = vsel %vm410, 1, 0
        %v427 = vsel %vm411, 1, 0
        %v428 = vsel %vm412, 1, 0
        %v429 = vsel %vm413, 1, 0
        %v430 = vsel %vm414, 1, 0
        %v431 = vsel %vm415, 1, 0
        %v432 = vsel %vm416, 1, 0
        %v433 = vsel %vm417, 1, 0
        %434 = vset.pattern.permute.xlu0 0
        %435 = vperm.xlu0 %434, %v418
        %v436 = vpop.permute.xlu0 %435
        %437 = vset.pattern.permute.xlu0 0
        %438 = vperm.xlu0 %437, %v419
        %v439 = vpop.permute.xlu0 %438
        %440 = vset.pattern.permute.xlu0 0
        %441 = vperm.xlu0 %440, %v420
        %v442 = vpop.permute.xlu0 %441
        %443 = vset.pattern.permute.xlu0 0
        %444 = vperm.xlu0 %443, %v421
        %v445 = vpop.permute.xlu0 %444
        %446 = vset.pattern.permute.xlu0 0
        %447 = vperm.xlu0 %446, %v422
        %v448 = vpop.permute.xlu0 %447
        %449 = vset.pattern.permute.xlu0 0
        %450 = vperm.xlu0 %449, %v423
        %v451 = vpop.permute.xlu0 %450
        %452 = vset.pattern.permute.xlu0 0
        %453 = vperm.xlu0 %452, %v424
        %v454 = vpop.permute.xlu0 %453
        %455 = vset.pattern.permute.xlu0 0
        %456 = vperm.xlu0 %455, %v425
        %v457 = vpop.permute.xlu0 %456
        %458 = vset.pattern.permute.xlu0 0
        %459 = vperm.xlu0 %458, %v426
        %v460 = vpop.permute.xlu0 %459
        %461 = vset.pattern.permute.xlu0 0
        %462 = vperm.xlu0 %461, %v427
        %v463 = vpop.permute.xlu0 %462
        %464 = vset.pattern.permute.xlu0 0
        %465 = vperm.xlu0 %464, %v428
        %v466 = vpop.permute.xlu0 %465
        %467 = vset.pattern.permute.xlu0 0
        %468 = vperm.xlu0 %467, %v429
        %v469 = vpop.permute.xlu0 %468
        %470 = vset.pattern.permute.xlu0 0
        %471 = vperm.xlu0 %470, %v430
        %v472 = vpop.permute.xlu0 %471
        %473 = vset.pattern.permute.xlu0 0
        %474 = vperm.xlu0 %473, %v431
        %v475 = vpop.permute.xlu0 %474
        %476 = vset.pattern.permute.xlu0 0
        %477 = vperm.xlu0 %476, %v432
        %v478 = vpop.permute.xlu0 %477
        %479 = vset.pattern.permute.xlu0 0
        %480 = vperm.xlu0 %479, %v433
        %v481 = vpop.permute.xlu0 %480
        %vm482 = vcmp.eq.s32.totalorder %v436, 1
        %vm483 = vcmp.eq.s32.totalorder %v439, 1
        %vm484 = vcmp.eq.s32.totalorder %v442, 1
        %vm485 = vcmp.eq.s32.totalorder %v445, 1
        %vm486 = vcmp.eq.s32.totalorder %v448, 1
        %vm487 = vcmp.eq.s32.totalorder %v451, 1
        %vm488 = vcmp.eq.s32.totalorder %v454, 1
        %vm489 = vcmp.eq.s32.totalorder %v457, 1
        %vm490 = vcmp.eq.s32.totalorder %v460, 1
        %vm491 = vcmp.eq.s32.totalorder %v463, 1
        %vm492 = vcmp.eq.s32.totalorder %v466, 1
        %vm493 = vcmp.eq.s32.totalorder %v469, 1
        %vm494 = vcmp.eq.s32.totalorder %v472, 1
        %vm495 = vcmp.eq.s32.totalorder %v475, 1
        %vm496 = vcmp.eq.s32.totalorder %v478, 1
        %vm497 = vcmp.eq.s32.totalorder %v481, 1
        %v498 = vsel %vm482, 1.0, %v371
        %v499 = vsel %vm483, 1.0, %v373
        %v500 = vsel %vm484, 1.0, %v375
        %v501 = vsel %vm485, 1.0, %v377
        %v502 = vsel %vm486, 1.0, %v379
        %v503 = vsel %vm487, 1.0, %v381
        %v504 = vsel %vm488, 1.0, %v383
        %v505 = vsel %vm489, 1.0, %v385
        %v506 = vsel %vm490, 1.0, %v387
        %v507 = vsel %vm491, 1.0, %v389
        %v508 = vsel %vm492, 1.0, %v391
        %v509 = vsel %vm493, 1.0, %v393
        %v510 = vsel %vm494, 1.0, %v395
        %v511 = vsel %vm495, 1.0, %v397
        %v512 = vsel %vm496, 1.0, %v399
        %v513 = vsel %vm497, 1.0, %v401
        %514 = vst [vmem:[%s251] sm:$0xff] %v498
        %515 = vst [vmem:[%s251 + $0x8] sm:$0xff] %v499
        %516 = vst [vmem:[%s251 + $0x10] sm:$0xff] %v500
        %517 = vst [vmem:[%s251 + $0x18] sm:$0xff] %v501
        %518 = vst [vmem:[%s251 + $0x20] sm:$0xff] %v502
        %519 = vst [vmem:[%s251 + $0x28] sm:$0xff] %v503
        %520 = vst [vmem:[%s251 + $0x30] sm:$0xff] %v504
        %521 = vst [vmem:[%s251 + $0x38] sm:$0xff] %v505
        %522 = vst [vmem:[%s251 + $0x40] sm:$0xff] %v506
        %523 = vst [vmem:[%s251 + $0x48] sm:$0xff] %v507
        %524 = vst [vmem:[%s251 + $0x50] sm:$0xff] %v508
        %525 = vst [vmem:[%s251 + $0x58] sm:$0xff] %v509
        %526 = vst [vmem:[%s251 + $0x60] sm:$0xff] %v510
        %527 = vst [vmem:[%s251 + $0x68] sm:$0xff] %v511
        %528 = vst [vmem:[%s251 + $0x70] sm:$0xff] %v512
        %529 = vst [vmem:[%s251 + $0x78] sm:$0xff] %v513
        %v530 = vld [vmem:[%s219] sm:$0xff]
        %v531 = vld [vmem:[%s219 + $0x8] sm:$0xff]
        %v532 = vld [vmem:[%s219 + $0x10] sm:$0xff]
        %v533 = vld [vmem:[%s219 + $0x18] sm:$0xff]
        %v534 = vld [vmem:[%s219 + $0x20] sm:$0xff]
        %v535 = vld [vmem:[%s219 + $0x28] sm:$0xff]
        %v536 = vld [vmem:[%s219 + $0x30] sm:$0xff]
        %v537 = vld [vmem:[%s219 + $0x38] sm:$0xff]
        %v538 = vld [vmem:[%s219 + $0x40] sm:$0xff]
        %v539 = vld [vmem:[%s219 + $0x48] sm:$0xff]
        %v540 = vld [vmem:[%s219 + $0x50] sm:$0xff]
        %v541 = vld [vmem:[%s219 + $0x58] sm:$0xff]
        %v542 = vld [vmem:[%s219 + $0x60] sm:$0xff]
        %v543 = vld [vmem:[%s219 + $0x68] sm:$0xff]
        %v544 = vld [vmem:[%s219 + $0x70] sm:$0xff]
        %v545 = vld [vmem:[%s219 + $0x78] sm:$0xff]
        %v546 = vmul.f32 %v498, %v530
        %v547 = vmul.f32 %v499, %v531
        %v548 = vmul.f32 %v500, %v532
        %v549 = vmul.f32 %v501, %v533
        %v550 = vmul.f32 %v502, %v534
        %v551 = vmul.f32 %v503, %v535
        %v552 = vmul.f32 %v504, %v536
        %v553 = vmul.f32 %v505, %v537
        %v554 = vmul.f32 %v506, %v538
        %v555 = vmul.f32 %v507, %v539
        %v556 = vmul.f32 %v508, %v540
        %v557 = vmul.f32 %v509, %v541
        %v558 = vmul.f32 %v510, %v542
        %v559 = vmul.f32 %v511, %v543
        %v560 = vmul.f32 %v512, %v544
        %v561 = vmul.f32 %v513, %v545
        %562 = vst [vmem:[%s258] sm:$0xff] %v546
        %563 = vst [vmem:[%s258 + $0x8] sm:$0xff] %v547
        %564 = vst [vmem:[%s258 + $0x10] sm:$0xff] %v548
        %565 = vst [vmem:[%s258 + $0x18] sm:$0xff] %v549
        %566 = vst [vmem:[%s258 + $0x20] sm:$0xff] %v550
        %567 = vst [vmem:[%s258 + $0x28] sm:$0xff] %v551
        %568 = vst [vmem:[%s258 + $0x30] sm:$0xff] %v552
        %569 = vst [vmem:[%s258 + $0x38] sm:$0xff] %v553
        %570 = vst [vmem:[%s258 + $0x40] sm:$0xff] %v554
        %571 = vst [vmem:[%s258 + $0x48] sm:$0xff] %v555
        %572 = vst [vmem:[%s258 + $0x50] sm:$0xff] %v556
        %573 = vst [vmem:[%s258 + $0x58] sm:$0xff] %v557
        %574 = vst [vmem:[%s258 + $0x60] sm:$0xff] %v558
        %575 = vst [vmem:[%s258 + $0x68] sm:$0xff] %v559
        %576 = vst [vmem:[%s258 + $0x70] sm:$0xff] %v560
        %577 = vst [vmem:[%s258 + $0x78] sm:$0xff] %v561
        %s578 = sand.u32 %s111, 1
        %s579 = scalar_lea.sflag [#allocation4], %s578
        %s580 = sand.u32 %s111, 1
        %s581 = smul.addr %s580, 128
        %s582 = scalar_lea.vmem [#allocation5], %s581
        %s583 = sand.u32 %s137, 1
        %s584 = scalar_lea.sflag [#allocation7], %s583
        %s585 = sand.u32 %s137, 1
        %s586 = smul.addr %s585, 128
        %s587 = scalar_lea.vmem [#allocation6], %s586
        // Predicated region
        $region37: #{tpu_custom_call.1} parent=31 // pred_check
          %p588 = pneg %p121
        $region38: #{tpu_custom_call.1} parent=31 // pred_check_branch
          %590 = sbr.rel (%p588) target = $region40
        $region39: #{tpu_custom_call.1} parent=31 // pred_region
          %s591 = smul.u32 16, %s25
          %s593 = ssub.s32 2048, 2048
          %594 = vsyncadd %s579, %s593
          %s595 = smul.addr %s591, 128
          %s596 = scalar_lea.hbm %s3, %s595
          %s597 = sshll.u32 %s582, 4
          %s598 = int_to_ptr.vmem [resolvable:$true] %s597
          %603 = dma.vmem_to_hbm [thread:$0]  %s598, 2048, %s596, %s579, 128, 128, 8
        $region40: #{tpu_custom_call.1} parent=31 // pred_fallthru
          _
        // Predicated region
        $region41: #{tpu_custom_call.1} parent=31 // pred_check
          %p604 = pneg %p147
        $region42: #{tpu_custom_call.1} parent=31 // pred_check_branch
          %606 = sbr.rel (%p604) target = $region44
        $region43: #{tpu_custom_call.1} parent=31 // pred_region
          %s607 = smul.u32 16, %s25
          %s609 = ssub.s32 2048, 2048
          %610 = vsyncadd %s584, %s609
          %s611 = smul.addr %s607, 128
          %s612 = scalar_lea.hbm %s4, %s611
          %s613 = sshll.u32 %s587, 4
          %s614 = int_to_ptr.vmem [resolvable:$true] %s613
          %619 = dma.vmem_to_hbm [thread:$0]  %s614, 2048, %s612, %s584, 128, 128, 8
        $region44: #{tpu_custom_call.1} parent=31 // pred_fallthru
          _
      $region32: #{tpu_custom_call.1} parent=5 // pred_fallthru
        _
      %p620 = scmp.le.s32.totalorder 2, %s20
      // Predicated region
      $region45: #{tpu_custom_call.1} parent=5 // pred_check
        %p621 = pneg %p620
      $region46: #{tpu_custom_call.1} parent=5 // pred_check_branch
        %623 = sbr.rel (%p621) target = $region48
      $region47: #{tpu_custom_call.1} parent=5 // pred_region
        %s624 = ssub.s32 %s20, 2
        // Predicated region
        $region49: #{tpu_custom_call.1} parent=47 // pred_check
          %p625 = pneg %p127
        $region50: #{tpu_custom_call.1} parent=47 // pred_check_branch
          %627 = sbr.rel (%p625) target = $region52
        $region51: #{tpu_custom_call.1} parent=47 // pred_region
          %s628 = sand.u32 %s112, 1
          %s629 = scalar_lea.sflag [#allocation4], %s628
          %s630 = sand.u32 %s112, 1
          %s631 = smul.addr %s630, 128
          %s632 = scalar_lea.vmem [#allocation5], %s631
          %633 = dma.done %s629, 2048
        $region52: #{tpu_custom_call.1} parent=47 // pred_fallthru
          _
        // Predicated region
        $region53: #{tpu_custom_call.1} parent=47 // pred_check
          %p634 = pneg %p153
        $region54: #{tpu_custom_call.1} parent=47 // pred_check_branch
          %636 = sbr.rel (%p634) target = $region56
        $region55: #{tpu_custom_call.1} parent=47 // pred_region
          %s637 = sand.u32 %s138, 1
          %s638 = scalar_lea.sflag [#allocation7], %s637
          %s639 = sand.u32 %s138, 1
          %s640 = smul.addr %s639, 128
          %s641 = scalar_lea.vmem [#allocation6], %s640
          %642 = dma.done %s638, 2048
        $region56: #{tpu_custom_call.1} parent=47 // pred_fallthru
          _
      $region48: #{tpu_custom_call.1} parent=5 // pred_fallthru
        _
    $region6: #{tpu_custom_call.1} parent=1 // loop_footer
      %s24 = sadd.s32 1, %s20
    $region7: #{tpu_custom_call.1} parent=1 // loop_footer_branch
      %19 = sbr.rel target = $region3
    $region8: #{tpu_custom_call.1} parent=1 // loop_exit
      _
    %643 = vsyncpa [#allocation3], 1
    %s644 = scalar_lea.sflag [#allocation3], 1
    %645 = vsyncpa %s644, 1
    %646 = vsyncpa [#allocation4], 1
    %s647 = scalar_lea.sflag [#allocation4], 1
    %648 = vsyncpa %s647, 1
    %649 = vsyncpa [#allocation7], 1
    %s650 = scalar_lea.sflag [#allocation7], 1
    %651 = vsyncpa %s650, 1

</llo_original>
